<compile_context>
chip_gen: v7x
topology: tpu7x:2x2x1
jax: 0.10.0
libtpu: 0.0.40
codegen_flags: <defaults>
</compile_context>

<pallas_src>
import functools
import math

import jax
import jax.numpy as jnp
from jax import lax
from jax.experimental import pallas as pl
from jax.experimental.pallas import tpu as pltpu


def _spatial_memory_kernel(xpe_ref, wn_ref, out_ref, att_ref, *, mem_dim, m_pad):
    eps_sq = 1e-24  # (F.normalize eps = 1e-12) ** 2

    # --- F.normalize(input, dim=1): L2 over the spatial dim (EUP rsqrt) ---
    x_pe = xpe_ref[...]                                     # (TR, S) f32
    sq = jnp.sum(x_pe * x_pe, axis=1, keepdims=True)
    x_n = x_pe * lax.rsqrt(jnp.maximum(sq, eps_sq))         # f32

    w_n_b = wn_ref[...]                                     # (M_pad, S) bf16, pre-normalized
    x_n_b = x_n.astype(jnp.bfloat16)                        # bf16 MXU operand

    # --- logits = x_n @ w_n.T (transpose-free, native bf16 MXU, f32 accum) ---
    logits = lax.dot_general(
        x_n_b, w_n_b, (((1,), (1,)), ((), ())),
        preferred_element_type=jnp.float32)                 # (TR, M_pad)

    # Mask the lane-padding columns so they vanish in the softmax.
    if m_pad > mem_dim:
        col = lax.broadcasted_iota(jnp.int32, logits.shape, 1)
        logits = jnp.where(col < mem_dim, logits, -jnp.inf)

    # --- softmax(dim=1), f32; denominator reciprocal on the EUP ---
    m = jnp.max(logits, axis=1, keepdims=True)
    e = jnp.exp(logits - m)
    denom = jnp.sum(e, axis=1, keepdims=True)
    att = e * pl.reciprocal(denom, approx=True)             # (TR, M_pad) f32; pad cols are 0

    # --- output = att @ processed_memory (bf16 operands, f32 accum) ---
    out_ref[...] = jnp.dot(att.astype(jnp.bfloat16), w_n_b,
                           preferred_element_type=jnp.float32)

    # --- single unmasked, 128-lane-aligned attention store ---
    att_ref[...] = att


def _round_up(a: int, b: int) -> int:
    return ((a + b - 1) // b) * b


def _vmem_limit_bytes() -> int:
    """~75% of physical VMEM: ~48 MiB on v7x (64 MiB/TC), ~96 MiB on v5e/v6e."""
    cap = 64 * 1024 * 1024  # safe floor (v7x per-TensorCore VMEM)
    try:
        info = pltpu.get_tpu_info()
        cap = int(getattr(info, "vmem_capacity_bytes", cap))
    except Exception:
        pass
    return min((cap * 3) // 4, 100 * 1024 * 1024)


def _choose_row_tile(nc: int, s: int, m_pad: int, budget_bytes: int) -> int:
    """Row tile for the (N*C) axis.

    Honest per-row accounting: double-buffered f32 input/output tiles
    (x_pe in, out, att out) plus live in-kernel temporaries (x_n f32 + bf16,
    logits/e/att f32 + bf16).  Target at least ~4 grid steps when N*C allows
    it so the "parallel" axis shards across v7x's two TensorCores and the
    DMA/compute pipeline actually overlaps.
    """
    per_row = 24 * (s + m_pad)                     # bytes / row (conservative)
    cap = max(8, (budget_bytes // per_row) // 8 * 8)
    target = _round_up(max(8, -(-nc // 4)), 8)     # ceil(nc/4): >=4 steps if possible
    tr = min(512, cap, target)
    tr = max(8, (tr // 8) * 8)
    if nc > tr and tr >= 256:
        tr = (tr // 128) * 128                     # MXU/layout friendly when multi-step
    return tr


def spatial_memory_forward(x_nchw, weight, mem_dim, use_pos_encoding=True):
    """Forward pass of SpatialMemoryWithChannelWise (default flags:
    use_pos_encoding=True, normalize_memory=True, normalize_query=True,
    use_shared_mlp=False)."""
    # TODO(synk): use_shared_mlp=True branch (shared MLP on the memory) is not
    # implemented; the module default is False.
    N, C, H, W = x_nchw.shape
    S = H * W
    NC = N * C
    M = mem_dim

    x_flat = x_nchw.reshape(NC, S).astype(jnp.float32)

    # Positional-encoding table.  Matches PositionalEncodingChannelWise when it
    # is initialized by _initialize_modules with max_height=H, max_width=W:
    # pe[i] = sin(i / 10000 ** (i / (H*W))) for i in range(H*W).
    # The +0.1*pe add is one fused XLA broadcast add and *is* 'input_flat',
    # so the kernel does not have to write that stream.
    if use_pos_encoding:
        idx = jnp.arange(S, dtype=jnp.float32)
        pe = jnp.sin(idx / jnp.power(10000.0, idx / float(S)))
        x_pe = x_flat + 0.1 * pe[None, :]
    else:
        x_pe = x_flat

    # Hoisted: memory normalization + memory-only products (tiny, done once).
    w = weight.astype(jnp.float32)
    w_norm = jnp.sqrt(jnp.sum(w * w, axis=1, keepdims=True))
    w_n = w / jnp.maximum(w_norm, 1e-12)                 # processed_memory (M, S)
    mem_fea_align = jnp.matmul(w_n, w_n.T)               # (M, M)

    # Lane-dense memory: pad to a multiple of 128 rows (zero rows), bf16 for
    # the MXU (f32 accumulation stays in the kernel).
    M_pad = _round_up(max(M, 1), 128)
    w_n_padded = w_n if M_pad == M else jnp.pad(w_n, ((0, M_pad - M), (0, 0)))
    w_n_bf16 = w_n_padded.astype(jnp.bfloat16)

    # VMEM budgeting / tiling of the N*C row axis.
    vmem_limit = _vmem_limit_bytes()
    fixed = 2 * (M_pad * S * 2) + M_pad * S * 4          # buffered bf16 weight + slack
    budget = max(1 << 20, vmem_limit - fixed - (6 << 20))  # Mosaic scratch margin
    TR = _choose_row_tile(NC, S, M_pad, budget)
    NC_pad = _round_up(NC, TR)
    if NC_pad != NC:
        x_pe_in = jnp.pad(x_pe, ((0, NC_pad - NC), (0, 0)))
    else:
        x_pe_in = x_pe
    grid = (NC_pad // TR,)

    kernel = functools.partial(_spatial_memory_kernel, mem_dim=M, m_pad=M_pad)

    out_shapes = (
        jax.ShapeDtypeStruct((NC_pad, S), jnp.float32),      # output (flat)
        jax.ShapeDtypeStruct((NC_pad, M_pad), jnp.float32),  # raw attention (padded)
    )

    y_flat, att_padded = pl.pallas_call(
        kernel,
        out_shape=out_shapes,
        grid_spec=pltpu.PrefetchScalarGridSpec(
            num_scalar_prefetch=0,
            grid=grid,
            in_specs=[
                pl.BlockSpec((TR, S), lambda i: (i, 0)),       # x + 0.1*pe rows
                pl.BlockSpec((M_pad, S), lambda i: (0, 0)),    # normalized memory (bf16)
            ],
            out_specs=[
                pl.BlockSpec((TR, S), lambda i: (i, 0)),       # output
                pl.BlockSpec((TR, M_pad), lambda i: (i, 0)),   # raw attention
            ],
        ),
        compiler_params=pltpu.CompilerParams(
            dimension_semantics=("parallel",),                 # row tiles independent
            vmem_limit_bytes=vmem_limit,
        ),
    )(x_pe_in, w_n_bf16)

    if NC_pad != NC:
        y_flat = y_flat[:NC]
    att = att_padded[:NC, :M]

    # --- glue (same as the PyTorch wrapper code outside the memory unit) ---
    y = y_flat.reshape(N, C, H, W)
    att_reshaped = att.reshape(N, C, M)
    att_channel_avg = att_reshaped.mean(axis=1)                 # (N, M)
    att_spatial = jnp.broadcast_to(
        att_channel_avg[:, :, None, None], (N, M, H, W))

    return {
        'output': y,
        'att': att_spatial,
        'mem_fea_align': mem_fea_align,
        'processed_memory': w_n,
        'input_flat': x_pe,
        'raw_attention': att,
    }


if __name__ == "__main__":
    # Small shapes consistent with the module: N=2, C=4, H=W=16, mem_dim=32
    N, C, H, W = 2, 4, 16, 16
    mem_dim = 32
    S = H * W

    key = jax.random.PRNGKey(0)
    k_x, k_w = jax.random.split(key)
    x = jax.random.normal(k_x, (N, C, H, W), dtype=jnp.float32)

    # Deterministic init matching MemoryUnitChannelWise.reset_parameters:
    # uniform(-stdv, stdv), stdv = 1/sqrt(spatial_dim)
    stdv = 1.0 / math.sqrt(S)
    weight = jax.random.uniform(
        k_w, (mem_dim, S), dtype=jnp.float32, minval=-stdv, maxval=stdv)

    result = spatial_memory_forward(x, weight, mem_dim)
    jax.block_until_ready(result)

    # Shape checks mirroring the PyTorch return dict.
    assert result['output'].shape == (N, C, H, W)
    assert result['att'].shape == (N, mem_dim, H, W)
    assert result['mem_fea_align'].shape == (mem_dim, mem_dim)
    assert result['processed_memory'].shape == (mem_dim, S)
    assert result['input_flat'].shape == (N * C, S)
    assert result['raw_attention'].shape == (N * C, mem_dim)

    # Pure-JAX reference check of the hot path.
    x_flat = x.reshape(N * C, S)
    idx = jnp.arange(S, dtype=jnp.float32)
    pe = jnp.sin(idx / jnp.power(10000.0, idx / float(S)))
    x_pe_ref = x_flat + 0.1 * pe
    x_n_ref = x_pe_ref / jnp.maximum(
        jnp.linalg.norm(x_pe_ref, axis=1, keepdims=True), 1e-12)
    w_n_ref = weight / jnp.maximum(
        jnp.linalg.norm(weight, axis=1, keepdims=True), 1e-12)
    ref_att = jax.nn.softmax(x_n_ref @ w_n_ref.T, axis=1)
    ref_out = (ref_att @ w_n_ref).reshape(N, C, H, W)

    assert bool(jnp.all(jnp.isfinite(result['output'])))
    assert bool(jnp.allclose(result['input_flat'], x_pe_ref, atol=1e-5, rtol=1e-5))
    # bf16 MXU operands + approx reciprocal: tolerances absorb the precision change.
    assert bool(jnp.allclose(result['raw_attention'], ref_att, atol=2e-3, rtol=2e-3))
    assert bool(jnp.allclose(result['output'], ref_out, atol=2e-3, rtol=2e-3))

    print("KERNEL_OK")
</pallas_src>

<mosaic_0001>
module attributes {stable_mosaic.version = 11 : i64} {
  func.func @_spatial_memory_kernel(%arg0: i32, %arg1: memref<8x256xf32, #tpu.memory_space<vmem>>, %arg2: memref<128x256xbf16, #tpu.memory_space<vmem>>, %arg3: memref<8x256xf32, #tpu.memory_space<vmem>>, %arg4: memref<8x128xf32, #tpu.memory_space<vmem>>) attributes {dimension_semantics = [#tpu.dimension_semantics<parallel>], iteration_bounds = array<i64: 1>, scalar_prefetch = 0 : i64, scratch_operands = 0 : i64, tpu.core_type = #tpu.core_type<tc>, window_params = [{transform_indices = @transform_0, window_bounds = array<i64: 8, 256>}, {pipeline_mode = #tpu.pipeline_mode<synchronous>, transform_indices = @transform_1, window_bounds = array<i64: 128, 256>}, {transform_indices = @transform_2, window_bounds = array<i64: 8, 256>}, {transform_indices = @transform_3, window_bounds = array<i64: 8, 128>}]} {
    %c0 = arith.constant 0 : index
    %c0_0 = arith.constant 0 : index
    %0 = vector.load %arg1[%c0, %c0_0] : memref<8x256xf32, #tpu.memory_space<vmem>>, vector<8x256xf32>
    %1 = arith.mulf %0, %0 : vector<8x256xf32>
    %cst = arith.constant dense<0.000000e+00> : vector<8xf32>
    %2 = vector.multi_reduction <add>, %1, %cst [1] : vector<8x256xf32> to vector<8xf32>
    %3 = vector.shape_cast %2 : vector<8xf32> to vector<8x1xf32>
    %cst_1 = arith.constant 1.000000e-24 : f32
    %4 = vector.broadcast %cst_1 : f32 to vector<8x1xf32>
    %5 = arith.maximumf %3, %4 : vector<8x1xf32>
    %6 = math.rsqrt %5 : vector<8x1xf32>
    %7 = vector.broadcast %6 : vector<8x1xf32> to vector<8x256xf32>
    %8 = arith.mulf %0, %7 : vector<8x256xf32>
    %c0_2 = arith.constant 0 : index
    %c0_3 = arith.constant 0 : index
    %9 = vector.load %arg2[%c0_2, %c0_3] : memref<128x256xbf16, #tpu.memory_space<vmem>>, vector<128x256xbf16>
    %10 = arith.truncf %8 : vector<8x256xf32> to vector<8x256xbf16>
    %cst_4 = arith.constant dense<0.000000e+00> : vector<8x128xf32>
    %11 = tpu.matmul %10, %9, %cst_4 {dimension_numbers = #tpu.dot_dimension_numbers<[1], [1], [0], [0], [0, 0, 1, 0], [], []>} : vector<8x256xbf16>, vector<128x256xbf16>, vector<8x128xf32> -> vector<8x128xf32>
    %12 = tpu.iota {dimensions = array<i32: 1>} : vector<8x128xi32>
    %c32_i32 = arith.constant 32 : i32
    %13 = vector.broadcast %c32_i32 : i32 to vector<8x128xi32>
    %14 = arith.cmpi slt, %12, %13 : vector<8x128xi32>
    %cst_5 = arith.constant 0xFF800000 : f32
    %15 = vector.broadcast %cst_5 : f32 to vector<8x128xf32>
    %16 = arith.select %14, %11, %15 : vector<8x128xi1>, vector<8x128xf32>
    %cst_6 = arith.constant dense<0xFF800000> : vector<8xf32>
    %17 = vector.multi_reduction <maximumf>, %16, %cst_6 [1] : vector<8x128xf32> to vector<8xf32>
    %18 = vector.shape_cast %17 : vector<8xf32> to vector<8x1xf32>
    %19 = vector.broadcast %18 : vector<8x1xf32> to vector<8x128xf32>
    %20 = arith.subf %16, %19 : vector<8x128xf32>
    %21 = math.exp %20 : vector<8x128xf32>
    %cst_7 = arith.constant dense<0.000000e+00> : vector<8xf32>
    %22 = vector.multi_reduction <add>, %21, %cst_7 [1] : vector<8x128xf32> to vector<8xf32>
    %23 = vector.shape_cast %22 : vector<8xf32> to vector<8x1xf32>
    %24 = tpu.reciprocal %23 {approx = true} : vector<8x1xf32> -> vector<8x1xf32>
    %25 = vector.broadcast %24 : vector<8x1xf32> to vector<8x128xf32>
    %26 = arith.mulf %21, %25 : vector<8x128xf32>
    %27 = arith.truncf %26 : vector<8x128xf32> to vector<8x128xbf16>
    %cst_8 = arith.constant dense<0.000000e+00> : vector<8x256xf32>
    %28 = tpu.matmul %27, %9, %cst_8 {dimension_numbers = #tpu.dot_dimension_numbers<[1], [0], [0], [1], [0, 0, 1, 1], [], []>} : vector<8x128xbf16>, vector<128x256xbf16>, vector<8x256xf32> -> vector<8x256xf32>
    %c0_9 = arith.constant 0 : index
    %c0_10 = arith.constant 0 : index
    %29 = vector.load %arg3[%c0_9, %c0_10] : memref<8x256xf32, #tpu.memory_space<vmem>>, vector<8x256xf32>
    tpu.vector_store %arg3[%c0_9, %c0_10], %28 {strides = array<i32>} : memref<8x256xf32, #tpu.memory_space<vmem>>, vector<8x256xf32>,
    %c0_11 = arith.constant 0 : index
    %c0_12 = arith.constant 0 : index
    %30 = vector.load %arg4[%c0_11, %c0_12] : memref<8x128xf32, #tpu.memory_space<vmem>>, vector<8x128xf32>
    tpu.vector_store %arg4[%c0_11, %c0_12], %26 {strides = array<i32>} : memref<8x128xf32, #tpu.memory_space<vmem>>, vector<8x128xf32>,
    return
  }
  func.func @transform_0(%arg0: i32) -> (i32, i32) {
    %c0_i32 = arith.constant 0 : i32
    %c0_i32_0 = arith.constant 0 : i32
    return %arg0, %c0_i32 : i32, i32
  }
  func.func @transform_1(%arg0: i32) -> (i32, i32) {
    %c0_i32 = arith.constant 0 : i32
    %c0_i32_0 = arith.constant 0 : i32
    %c0_i32_1 = arith.constant 0 : i32
    return %c0_i32, %c0_i32_0 : i32, i32
  }
  func.func @transform_2(%arg0: i32) -> (i32, i32) {
    %c0_i32 = arith.constant 0 : i32
    %c0_i32_0 = arith.constant 0 : i32
    return %arg0, %c0_i32 : i32, i32
  }
  func.func @transform_3(%arg0: i32) -> (i32, i32) {
    %c0_i32 = arith.constant 0 : i32
    %c0_i32_0 = arith.constant 0 : i32
    return %arg0, %c0_i32 : i32, i32
  }
}

</mosaic_0001>

<llo_original>
// kernel: tpu_custom_call.1
$region0: #{tpu_custom_call.1}
  #allocation0 [shape = 'u32[]', space=smem, size = 0x4, offset = 0x4, fixed_abs, tag = 'smem constant byte address 0x4 - core index']
  #allocation1 [shape = 'u32[144,128]{1,0:T(1,128)}', space=vmem, size = 0x12000, scoped, tag = 'internal scratch']
  %s0 = inlined_call_operand.hbm [shape: f32[8,256], index: 0, kind: input, shape index: {}]
  %s1 = inlined_call_operand.hbm [shape: bf16[128,256], index: 1, kind: input, shape index: {}]
  %s2 = inlined_call_operand.hbm [shape: f32[8,256], index: 2, kind: output, shape index: {0}]
  %s3 = inlined_call_operand.hbm [shape: f32[8,128], index: 3, kind: output, shape index: {1}]
  %4 = xla_tuple %s2, %s3
  %s5 = sld [smem:[#allocation0]]
  $region34: #{tpu_custom_call.1} parent=0
    _
  %s7 = ssub.s32 1, %s5
  %s8 = scalar_select 0, %s7, %s5
  $region1: #{tpu_custom_call.1} parent=0
    #allocation2 [shape = 'u8[8192]{0}', space=vmem, size = 0x2000, scoped, tag = 'input window, operand 0, single buffered']
    #allocation3 [shape = 's32[1]{0}', space=sflag, size = 0x4, scoped, tag = 'scoped memory for tpu_custom_call.1']
    #allocation4 [shape = 's32[1]{0}', space=sflag, size = 0x4, scoped, tag = 'scoped memory for tpu_custom_call.1']
    #allocation5 [shape = 'u8[65536]{0}', space=vmem, size = 0x10000, scoped, tag = 'input window, operand 1, single buffered']
    #allocation6 [shape = 's32[1]{0}', space=sflag, size = 0x4, scoped, tag = 'scoped memory for tpu_custom_call.1']
    #allocation7 [shape = 'u8[8192]{0}', space=vmem, size = 0x2000, scoped, tag = 'output window, operand 0, single buffered']
    #allocation8 [shape = 'u8[4096]{0}', space=vmem, size = 0x1000, scoped, tag = 'output window, operand 1, single buffered']
    #allocation9 [shape = 's32[1]{0}', space=sflag, size = 0x4, scoped, tag = 'scoped memory for tpu_custom_call.1']
    %9 = vsyncpa [#allocation3], 0
    %10 = vsyncpa [#allocation6], 0
    %11 = vsyncpa [#allocation4], 0
    %12 = vsyncpa [#allocation9], 0
    // Predicated region
    $region2: #{tpu_custom_call.1} parent=1 // pred_check
      _
    $region3: #{tpu_custom_call.1} parent=1 // pred_check_branch
      %14 = sbr.rel (0) target = $region5
    $region4: #{tpu_custom_call.1} parent=1 // pred_region
      %s16 = ssub.s32 256, 256
      %17 = vsyncadd [#allocation3], %s16
      %s19 = sshll.u32 [#allocation2], 4
      %s20 = int_to_ptr.vmem [resolvable:$true] %s19
      %22 = dma.hbm_to_vmem [thread:$0]  %s0, 256, %s20, [#allocation3]
    $region5: #{tpu_custom_call.1} parent=1 // pred_fallthru
      _
    // Predicated region
    $region6: #{tpu_custom_call.1} parent=1 // pred_check
      _
    $region7: #{tpu_custom_call.1} parent=1 // pred_check_branch
      %24 = sbr.rel (0) target = $region9
    $region8: #{tpu_custom_call.1} parent=1 // pred_region
      %s26 = ssub.s32 2048, 2048
      %27 = vsyncadd [#allocation6], %s26
      %s28 = sshll.u32 [#allocation5], 4
      %s29 = int_to_ptr.vmem [resolvable:$true] %s28
      %34 = dma.hbm_to_vmem [thread:$0]  %s1, 2048, %s29, [#allocation6], 128, 128, 8
    $region9: #{tpu_custom_call.1} parent=1 // pred_fallthru
      _
    // Predicated region
    $region10: #{tpu_custom_call.1} parent=1 // pred_check
      _
    $region11: #{tpu_custom_call.1} parent=1 // pred_check_branch
      %36 = sbr.rel (0) target = $region13
    $region12: #{tpu_custom_call.1} parent=1 // pred_region
      %37 = dma.done [#allocation3], 256
    $region13: #{tpu_custom_call.1} parent=1 // pred_fallthru
      _
    // Predicated region
    $region14: #{tpu_custom_call.1} parent=1 // pred_check
      _
    $region15: #{tpu_custom_call.1} parent=1 // pred_check_branch
      %39 = sbr.rel (0) target = $region17
    $region16: #{tpu_custom_call.1} parent=1 // pred_region
      %40 = dma.done [#allocation6], 2048
    $region17: #{tpu_custom_call.1} parent=1 // pred_fallthru
      _
    %v42 = vld [vmem:[#allocation2] sm:$0xff]
    %v43 = vld [vmem:[#allocation2 + $0x8] sm:$0xff]
    %v44 = vmul.f32 %v42, %v42
    %v45 = vmul.f32 %v43, %v43
    %v46 = vadd.f32 %v44, %v45
    %47 = vadd.xlane.f32.xlu0 %v46
    %v48 = vpop.xlane.xlu0 %47
    %v49 = vmax.f32 %v48, 1e-24
    %v50 = vrsqrt.pop %v49
    %v51 = vmul.f32 %v42, %v50
    %v52 = vmul.f32 %v43, %v50
    %v53 = vld [vmem:[#allocation5] sm:$0xff]
    %v54 = vld [vmem:[#allocation5 + $0x8] sm:$0xff]
    %v55 = vld [vmem:[#allocation5 + $0x10] sm:$0xff]
    %v56 = vld [vmem:[#allocation5 + $0x18] sm:$0xff]
    %v57 = vld [vmem:[#allocation5 + $0x20] sm:$0xff]
    %v58 = vld [vmem:[#allocation5 + $0x28] sm:$0xff]
    %v59 = vld [vmem:[#allocation5 + $0x30] sm:$0xff]
    %v60 = vld [vmem:[#allocation5 + $0x38] sm:$0xff]
    %v61 = vld [vmem:[#allocation5 + $0x40] sm:$0xff]
    %v62 = vld [vmem:[#allocation5 + $0x48] sm:$0xff]
    %v63 = vld [vmem:[#allocation5 + $0x50] sm:$0xff]
    %v64 = vld [vmem:[#allocation5 + $0x58] sm:$0xff]
    %v65 = vld [vmem:[#allocation5 + $0x60] sm:$0xff]
    %v66 = vld [vmem:[#allocation5 + $0x68] sm:$0xff]
    %v67 = vld [vmem:[#allocation5 + $0x70] sm:$0xff]
    %v68 = vld [vmem:[#allocation5 + $0x78] sm:$0xff]
    %v69 = vpack.c.bf16 %v51, %v51
    %v70 = vpack.c.bf16 %v52, %v52
    %v87 = vunpack.c.l.b16 %v53
    %v88 = vunpack.c.h.b16 %v53
    %v89 = vunpack.c.l.b16 %v54
    %v90 = vunpack.c.h.b16 %v54
    %v91 = vunpack.c.l.b16 %v55
    %v92 = vunpack.c.h.b16 %v55
    %v93 = vunpack.c.l.b16 %v56
    %v94 = vunpack.c.h.b16 %v56
    %v95 = vunpack.c.l.b16 %v57
    %v96 = vunpack.c.h.b16 %v57
    %v97 = vunpack.c.l.b16 %v58
    %v98 = vunpack.c.h.b16 %v58
    %v99 = vunpack.c.l.b16 %v59
    %v100 = vunpack.c.h.b16 %v59
    %v101 = vunpack.c.l.b16 %v60
    %v102 = vunpack.c.h.b16 %v60
    %v103 = vunpack.c.l.b16 %v61
    %v104 = vunpack.c.h.b16 %v61
    %v105 = vunpack.c.l.b16 %v62
    %v106 = vunpack.c.h.b16 %v62
    %v107 = vunpack.c.l.b16 %v63
    %v108 = vunpack.c.h.b16 %v63
    %v109 = vunpack.c.l.b16 %v64
    %v110 = vunpack.c.h.b16 %v64
    %v111 = vunpack.c.l.b16 %v65
    %v112 = vunpack.c.h.b16 %v65
    %v113 = vunpack.c.l.b16 %v66
    %v114 = vunpack.c.h.b16 %v66
    %v115 = vunpack.c.l.b16 %v67
    %v116 = vunpack.c.h.b16 %v67
    %v117 = vunpack.c.l.b16 %v68
    %v118 = vunpack.c.h.b16 %v68
    %v119 = vpack.c.b16 %v89, %v87
    %v120 = vpack.c.b16 %v90, %v88
    %v121 = vpack.c.b16 %v93, %v91
    %v122 = vpack.c.b16 %v94, %v92
    %v123 = vpack.c.b16 %v97, %v95
    %v124 = vpack.c.b16 %v98, %v96
    %v125 = vpack.c.b16 %v101, %v99
    %v126 = vpack.c.b16 %v102, %v100
    %v127 = vpack.c.b16 %v105, %v103
    %v128 = vpack.c.b16 %v106, %v104
    %v129 = vpack.c.b16 %v109, %v107
    %v130 = vpack.c.b16 %v110, %v108
    %v131 = vpack.c.b16 %v113, %v111
    %v132 = vpack.c.b16 %v114, %v112
    %v133 = vpack.c.b16 %v117, %v115
    %v134 = vpack.c.b16 %v118, %v116
    %151 = vmatprep.subr.bf16.mxu0 %v120
    %152 = vmatpush1.bf16.xpose.msra.mxu0 %v119
    %153 = vmatprep.subr.bf16.mxu0 %v122
    %154 = vmatpush1.bf16.xpose.msra.mxu0 %v121
    %155 = vmatprep.subr.bf16.mxu0 %v124
    %156 = vmatpush1.bf16.xpose.msra.mxu0 %v123
    %157 = vmatprep.subr.bf16.mxu0 %v126
    %158 = vmatpush1.bf16.xpose.msra.mxu0 %v125
    %159 = vmatprep.subr.bf16.mxu0 %v128
    %160 = vmatpush1.bf16.xpose.msra.mxu0 %v127
    %161 = vmatprep.subr.bf16.mxu0 %v130
    %162 = vmatpush1.bf16.xpose.msra.mxu0 %v129
    %163 = vmatprep.subr.bf16.mxu0 %v132
    %164 = vmatpush1.bf16.xpose.msra.mxu0 %v131
    %165 = vmatprep.subr.bf16.mxu0 %v134
    %166 = vmatpush1.bf16.xpose.msra.mxu0 %v133
    %167 = vmatprep.subr.bf16.mxu0 0
    %168 = vmatpush1.bf16.xpose.msra.mxu0 0
    %169 = vmatprep.subr.bf16.mxu0 0
    %170 = vmatpush1.bf16.xpose.msra.mxu0 0
    %171 = vmatprep.subr.bf16.mxu0 0
    %172 = vmatpush1.bf16.xpose.msra.mxu0 0
    %173 = vmatprep.subr.bf16.mxu0 0
    %174 = vmatpush1.bf16.xpose.msra.mxu0 0
    %175 = vmatprep.subr.bf16.mxu0 0
    %176 = vmatpush1.bf16.xpose.msra.mxu0 0
    %177 = vmatprep.subr.bf16.mxu0 0
    %178 = vmatpush1.bf16.xpose.msra.mxu0 0
    %179 = vmatprep.subr.bf16.mxu0 0
    %180 = vmatpush1.bf16.xpose.msra.mxu0 0
    %181 = vmatprep.subr.bf16.mxu0 0
    %182 = vmatpush1.bf16.xpose.msra.mxu0 0
    %183 = vmatprep.mubr.bf16.mxu0 %v70
    %184 = vmatmul.mubr.bf16.gmra.mrb[0].mxu0 %v69
    %v185 = vpop.f32.mrb[0].mxu0
    %v186 = vadd.f32 0.0, %v185
    %v187 = vpop.f32.mrb[0].mxu0
    %v188 = vpop.f32.mrb[0].mxu0
    %v189 = vpop.f32.mrb[0].mxu0
    %190 = vdwg.mxu0
    %v191 = vlaneseq
    %v192 = vand.u32 %v191, 127
    %vm193 = vcmp.lt.s32.totalorder %v192, 32
    %v194 = vsel %vm193, %v186, -inf
    %195 = vmax.xlane.f32.xlu0 %v194
    %v196 = vpop.xlane.xlu0 %195
    %v197 = vsub.f32 %v194, %v196
    %v198 = vmul.f32 %v197, 1.442695
    %v199 = vpow.pop %v198
    %200 = vadd.xlane.f32.xlu0 %v199
    %v201 = vpop.xlane.xlu0 %200
    %v202 = vrcp.pop %v201
    %v203 = vmul.f32 %v199, %v202
    %v204 = vpack.c.bf16 %v203, %v203
    %205 = vmatprep.subr.bf16.mxu0 %v120
    %206 = vmatpush1.bf16.msra.mxu0 %v119
    %207 = vmatprep.subr.bf16.mxu0 %v122
    %208 = vmatpush1.bf16.msra.mxu0 %v121
    %209 = vmatprep.subr.bf16.mxu0 %v124
    %210 = vmatpush1.bf16.msra.mxu0 %v123
    %211 = vmatprep.subr.bf16.mxu0 %v126
    %212 = vmatpush1.bf16.msra.mxu0 %v125
    %213 = vmatprep.subr.bf16.mxu0 %v128
    %214 = vmatpush1.bf16.msra.mxu0 %v127
    %215 = vmatprep.subr.bf16.mxu0 %v130
    %216 = vmatpush1.bf16.msra.mxu0 %v129
    %217 = vmatprep.subr.bf16.mxu0 %v132
    %218 = vmatpush1.bf16.msra.mxu0 %v131
    %219 = vmatprep.subr.bf16.mxu0 %v134
    %220 = vmatpush1.bf16.msra.mxu0 %v133
    %221 = vmatprep.subr.bf16.mxu0 0
    %222 = vmatpush1.bf16.msra.mxu0 0
    %223 = vmatprep.subr.bf16.mxu0 0
    %224 = vmatpush1.bf16.msra.mxu0 0
    %225 = vmatprep.subr.bf16.mxu0 0
    %226 = vmatpush1.bf16.msra.mxu0 0
    %227 = vmatprep.subr.bf16.mxu0 0
    %228 = vmatpush1.bf16.msra.mxu0 0
    %229 = vmatprep.subr.bf16.mxu0 0
    %230 = vmatpush1.bf16.msra.mxu0 0
    %231 = vmatprep.subr.bf16.mxu0 0
    %232 = vmatpush1.bf16.msra.mxu0 0
    %233 = vmatprep.subr.bf16.mxu0 0
    %234 = vmatpush1.bf16.msra.mxu0 0
    %235 = vmatprep.subr.bf16.mxu0 0
    %236 = vmatpush1.bf16.msra.mxu0 0
    %237 = vmatprep.mubr.bf16.mxu0 0
    %238 = vmatmul.mubr.bf16.gmra.mrb[0].mxu0 %v204
    %v239 = vpop.f32.mrb[0].mxu0
    %v240 = vadd.f32 0.0, %v239
    %v241 = vpop.f32.mrb[0].mxu0
    %v242 = vadd.f32 0.0, %v241
    %v243 = vpop.f32.mrb[0].mxu0
    %v244 = vpop.f32.mrb[0].mxu0
    %245 = vdwg.mxu0
    %246 = vst [vmem:[#allocation7] sm:$0xff] %v240
    %247 = vst [vmem:[#allocation7 + $0x8] sm:$0xff] %v242
    %248 = vst [vmem:[#allocation8] sm:$0xff] %v203
    // Predicated region
    $region18: #{tpu_custom_call.1} parent=1 // pred_check
      _
    $region19: #{tpu_custom_call.1} parent=1 // pred_check_branch
      %250 = sbr.rel (0) target = $region21
    $region20: #{tpu_custom_call.1} parent=1 // pred_region
      %s252 = ssub.s32 256, 256
      %253 = vsyncadd [#allocation4], %s252
      %s255 = sshll.u32 [#allocation7], 4
      %s256 = int_to_ptr.vmem [resolvable:$true] %s255
      %258 = dma.vmem_to_hbm [thread:$0]  %s256, 256, %s2, [#allocation4]
    $region21: #{tpu_custom_call.1} parent=1 // pred_fallthru
      _
    // Predicated region
    $region22: #{tpu_custom_call.1} parent=1 // pred_check
      _
    $region23: #{tpu_custom_call.1} parent=1 // pred_check_branch
      %260 = sbr.rel (0) target = $region25
    $region24: #{tpu_custom_call.1} parent=1 // pred_region
      %s262 = ssub.s32 128, 128
      %263 = vsyncadd [#allocation9], %s262
      %s265 = sshll.u32 [#allocation8], 4
      %s266 = int_to_ptr.vmem [resolvable:$true] %s265
      %268 = dma.vmem_to_hbm [thread:$0]  %s266, 128, %s3, [#allocation9]
    $region25: #{tpu_custom_call.1} parent=1 // pred_fallthru
      _
    // Predicated region
    $region26: #{tpu_custom_call.1} parent=1 // pred_check
      _
    $region27: #{tpu_custom_call.1} parent=1 // pred_check_branch
      %270 = sbr.rel (0) target = $region29
    $region28: #{tpu_custom_call.1} parent=1 // pred_region
      %271 = dma.done [#allocation4], 256
    $region29: #{tpu_custom_call.1} parent=1 // pred_fallthru
      _
    // Predicated region
    $region30: #{tpu_custom_call.1} parent=1 // pred_check
      _
    $region31: #{tpu_custom_call.1} parent=1 // pred_check_branch
      %273 = sbr.rel (0) target = $region33
    $region32: #{tpu_custom_call.1} parent=1 // pred_region
      %274 = dma.done [#allocation9], 128
    $region33: #{tpu_custom_call.1} parent=1 // pred_fallthru
      _
    %275 = vsyncpa [#allocation3], 1
    %276 = vsyncpa [#allocation6], 1
    %277 = vsyncpa [#allocation4], 1
    %278 = vsyncpa [#allocation9], 1

</llo_original>
